<compile_context>
chip_gen: v7x
topology: tpu7x:2x2x1
jax: 0.10.0
libtpu: 0.0.40
codegen_flags: <defaults>
</compile_context>

<pallas_src>
import jax
import jax.numpy as jnp
from jax.experimental import pallas as pl
from jax.experimental.pallas import tpu as pltpu


# ------------------------------ kernel bodies -------------------------------
def _copy_kernel(x_ref, o_ref):
    """Lane-dense tiled copy: both refs are (TR, TL) blocks."""
    o_ref[...] = x_ref[...]


def _chomp_slice_kernel(x_ref, o_ref):
    """Small-L fallback: x_ref is (TR, L), o_ref is (TR, L_out); static slice."""
    o_ref[...] = x_ref[:, : o_ref.shape[-1]]


# ----------------------------- tile selection --------------------------------
_MAX_TL = 2048  # lane-tile cap (multiple of 128); >=512 already ~85% of HBM roofline


def _vmem_budget():
    """Return (block_byte_budget, vmem_limit_bytes) for this TPU generation."""
    cap = None
    try:
        cap = getattr(pltpu.get_tpu_info(), "vmem_capacity_bytes", None)
    except Exception:
        cap = None
    if cap is None:
        cap = 64 << 20  # conservative fallback: v7x per-TensorCore VMEM
    if cap >= (128 << 20):   # v5e / v6e: 128 MiB physical (16/32 MiB scoped default)
        limit = 96 << 20
    else:                    # v7x: 64 MiB physical — leave headroom
        limit = 40 << 20
    # Double-buffered input + output blocks must fit well inside the limit.
    return limit // 2, limit


def _sublane_multiple(itemsize):
    # 8 rows for 32-bit, 16 for 16-bit, 32 for 8-bit (packed sublane layouts).
    return max(8, 32 // max(1, itemsize))


def _pick_tiles(rows, l_out, itemsize, budget_bytes):
    """Pick (TR, TL) for the lane-dense path (requires l_out >= 128)."""
    sub = _sublane_multiple(itemsize)
    tl = min(_MAX_TL, (l_out // 128) * 128)            # lane tile, multiple of 128
    # Per grid step: 2 buffers x (input block + output block) = 4 * TR * TL * itemsize.
    max_tr = max(sub, budget_bytes // (4 * tl * itemsize))
    tr = max(sub, (max_tr // sub) * sub)
    tr = min(tr, rows)                                  # full-dim block ok if rows < sub
    # v7x megacore: make sure at least one "parallel" axis has >= 2 steps.
    if pl.cdiv(l_out, tl) < 2 and pl.cdiv(rows, tr) < 2 and rows > sub:
        tr = min(rows, sub * pl.cdiv(pl.cdiv(rows, 2), sub))
    return tr, tl


def _pick_rows_full_l(rows, l_in, l_out, itemsize, budget_bytes):
    """Row tile for the small-L fallback (full-extent last dims)."""
    sub = _sublane_multiple(itemsize)
    per_row = 2 * (l_in + l_out) * itemsize             # double-buffered in + out
    max_tr = max(sub, budget_bytes // per_row)
    tr = max(sub, (max_tr // sub) * sub)
    return min(tr, rows)


# --------------------------------- wrapper -----------------------------------
def chomp1d(x, chomp_size):
    """Pallas equivalent of Chomp1d: returns x[:, :, :-chomp_size] (fresh copy)."""
    B, C, L = x.shape
    if chomp_size == 0:
        # Intended Chomp1d(0) semantics: no-op (input is already contiguous).
        return x
    if not (0 < chomp_size < L):
        raise ValueError(f"chomp_size must be in [0, L); got {chomp_size} for L={L}")

    L_out = L - chomp_size
    rows = B * C
    x2 = x.reshape(rows, L)                              # free: contiguous reshape
    itemsize = jnp.dtype(x.dtype).itemsize
    budget, vmem_limit = _vmem_budget()

    if L_out >= 128:
        # Lane-dense path: tile L_out in 128-multiples; never read the chomped tail.
        tr, tl = _pick_tiles(rows, L_out, itemsize, budget)
        out2 = pl.pallas_call(
            _copy_kernel,
            out_shape=jax.ShapeDtypeStruct((rows, L_out), x.dtype),
            grid=(pl.cdiv(rows, tr), pl.cdiv(L_out, tl)),
            in_specs=[pl.BlockSpec((tr, tl), lambda r, l: (r, l))],
            out_specs=pl.BlockSpec((tr, tl), lambda r, l: (r, l)),
            compiler_params=pltpu.CompilerParams(
                dimension_semantics=("parallel", "parallel"),
                vmem_limit_bytes=vmem_limit,
            ),
        )(x2)
    else:
        # Small sequences: full-extent last dims (BlockSpec rule) + in-kernel slice.
        tr = _pick_rows_full_l(rows, L, L_out, itemsize, budget)
        out2 = pl.pallas_call(
            _chomp_slice_kernel,
            out_shape=jax.ShapeDtypeStruct((rows, L_out), x.dtype),
            grid=(pl.cdiv(rows, tr),),
            in_specs=[pl.BlockSpec((tr, L), lambda r: (r, 0))],
            out_specs=pl.BlockSpec((tr, L_out), lambda r: (r, 0)),
            compiler_params=pltpu.CompilerParams(
                dimension_semantics=("parallel",),
                vmem_limit_bytes=vmem_limit,
            ),
        )(x2)

    return out2.reshape(B, C, L_out)


# ----------------------------------- main ------------------------------------
if __name__ == "__main__":
    key = jax.random.PRNGKey(0)

    # 1) Small TCN-like shape (exercises the small-L fallback path).
    B, C, L, chomp = 2, 4, 16, 2
    x = jax.random.normal(key, (B, C, L), jnp.float32)
    out = jax.block_until_ready(chomp1d(x, chomp))
    ref = x[:, :, :-chomp]
    assert out.shape == (B, C, L - chomp) and out.dtype == x.dtype
    assert jnp.array_equal(out, ref), "fallback-path mismatch"

    # 2) Lane-dense tiled path, rows not a multiple of 8 and partial last L tile.
    xa = jax.random.normal(jax.random.PRNGKey(0), (3, 5, 300), jnp.float32)
    outa = jax.block_until_ready(chomp1d(xa, 7))
    assert jnp.array_equal(outa, xa[:, :, :-7]), "tiled-path mismatch (partial tiles)"

    # 3) Lane-dense tiled path where the padded edge input block extends past L.
    xb = jax.random.normal(jax.random.PRNGKey(0), (2, 8, 260), jnp.float32)
    outb = jax.block_until_ready(chomp1d(xb, 2))
    assert jnp.array_equal(outb, xb[:, :, :-2]), "tiled-path mismatch (edge block)"

    # 4) chomp_size == 0 is a no-op.
    out0 = jax.block_until_ready(chomp1d(x, 0))
    assert jnp.array_equal(out0, x)

    print("KERNEL_OK")
</pallas_src>

<mosaic_0001>
module attributes {stable_mosaic.version = 11 : i64} {
  func.func @_chomp_slice_kernel(%arg0: i32, %arg1: memref<8x16xf32, #tpu.memory_space<vmem>>, %arg2: memref<8x14xf32, #tpu.memory_space<vmem>>) attributes {dimension_semantics = [#tpu.dimension_semantics<parallel>], iteration_bounds = array<i64: 1>, scalar_prefetch = 0 : i64, scratch_operands = 0 : i64, tpu.core_type = #tpu.core_type<tc>, window_params = [{transform_indices = @transform_0, window_bounds = array<i64: 8, 16>}, {transform_indices = @transform_1, window_bounds = array<i64: 8, 14>}]} {
    %c0 = arith.constant 0 : index
    %c0_0 = arith.constant 0 : index
    %0 = vector.load %arg1[%c0, %c0_0] : memref<8x16xf32, #tpu.memory_space<vmem>>, vector<8x14xf32>
    %c0_1 = arith.constant 0 : index
    %c0_2 = arith.constant 0 : index
    %1 = vector.load %arg2[%c0_1, %c0_2] : memref<8x14xf32, #tpu.memory_space<vmem>>, vector<8x14xf32>
    tpu.vector_store %arg2[%c0_1, %c0_2], %0 {strides = array<i32>} : memref<8x14xf32, #tpu.memory_space<vmem>>, vector<8x14xf32>,
    return
  }
  func.func @transform_0(%arg0: i32) -> (i32, i32) {
    %c0_i32 = arith.constant 0 : i32
    %c0_i32_0 = arith.constant 0 : i32
    return %arg0, %c0_i32 : i32, i32
  }
  func.func @transform_1(%arg0: i32) -> (i32, i32) {
    %c0_i32 = arith.constant 0 : i32
    %c0_i32_0 = arith.constant 0 : i32
    return %arg0, %c0_i32 : i32, i32
  }
}

</mosaic_0001>

<llo_original>
// kernel: tpu_custom_call.1
$region0: #{tpu_custom_call.1}
  #allocation0 [shape = 'u32[]', space=smem, size = 0x4, offset = 0x4, fixed_abs, tag = 'smem constant byte address 0x4 - core index']
  #allocation1 [shape = 'u32[144,128]{1,0:T(1,128)}', space=vmem, size = 0x12000, scoped, tag = 'internal scratch']
  %s0 = inlined_call_operand.hbm [shape: f32[8,16], index: 0, kind: input, shape index: {}]
  %s1 = inlined_call_operand.hbm [shape: f32[8,14], index: 1, kind: output, shape index: {}]
  %s2 = sld [smem:[#allocation0]]
  $region18: #{tpu_custom_call.1} parent=0
    _
  %s4 = ssub.s32 1, %s2
  %s5 = scalar_select 0, %s4, %s2
  $region1: #{tpu_custom_call.1} parent=0
    #allocation2 [shape = 'u8[4096]{0}', space=vmem, size = 0x1000, scoped, tag = 'input window, operand 0, single buffered']
    #allocation3 [shape = 's32[1]{0}', space=sflag, size = 0x4, scoped, tag = 'scoped memory for tpu_custom_call.1']
    #allocation4 [shape = 's32[1]{0}', space=sflag, size = 0x4, scoped, tag = 'scoped memory for tpu_custom_call.1']
    #allocation5 [shape = 'u8[4096]{0}', space=vmem, size = 0x1000, scoped, tag = 'output window, operand 0, single buffered']
    %6 = vsyncpa [#allocation3], 0
    %7 = vsyncpa [#allocation4], 0
    // Predicated region
    $region2: #{tpu_custom_call.1} parent=1 // pred_check
      _
    $region3: #{tpu_custom_call.1} parent=1 // pred_check_branch
      %9 = sbr.rel (0) target = $region5
    $region4: #{tpu_custom_call.1} parent=1 // pred_region
      %s11 = ssub.s32 128, 128
      %12 = vsyncadd [#allocation3], %s11
      %s14 = sshll.u32 [#allocation2], 4
      %s15 = int_to_ptr.vmem [resolvable:$true] %s14
      %17 = dma.hbm_to_vmem [thread:$0]  %s0, 128, %s15, [#allocation3]
    $region5: #{tpu_custom_call.1} parent=1 // pred_fallthru
      _
    // Predicated region
    $region6: #{tpu_custom_call.1} parent=1 // pred_check
      _
    $region7: #{tpu_custom_call.1} parent=1 // pred_check_branch
      %19 = sbr.rel (0) target = $region9
    $region8: #{tpu_custom_call.1} parent=1 // pred_region
      %20 = dma.done [#allocation3], 128
    $region9: #{tpu_custom_call.1} parent=1 // pred_fallthru
      _
    %v21 = vld [vmem:[#allocation2] sm:$0xff]
    %vm22 = vcmask 113664
    %23 = vst.msk [vmem:[#allocation5] sm:$0xff] %vm22, %v21
    // Predicated region
    $region10: #{tpu_custom_call.1} parent=1 // pred_check
      _
    $region11: #{tpu_custom_call.1} parent=1 // pred_check_branch
      %25 = sbr.rel (0) target = $region13
    $region12: #{tpu_custom_call.1} parent=1 // pred_region
      %s27 = ssub.s32 128, 128
      %28 = vsyncadd [#allocation4], %s27
      %s30 = sshll.u32 [#allocation5], 4
      %s31 = int_to_ptr.vmem [resolvable:$true] %s30
      %33 = dma.vmem_to_hbm [thread:$0]  %s31, 128, %s1, [#allocation4]
    $region13: #{tpu_custom_call.1} parent=1 // pred_fallthru
      _
    // Predicated region
    $region14: #{tpu_custom_call.1} parent=1 // pred_check
      _
    $region15: #{tpu_custom_call.1} parent=1 // pred_check_branch
      %35 = sbr.rel (0) target = $region17
    $region16: #{tpu_custom_call.1} parent=1 // pred_region
      %36 = dma.done [#allocation4], 128
    $region17: #{tpu_custom_call.1} parent=1 // pred_fallthru
      _
    %37 = vsyncpa [#allocation3], 1
    %38 = vsyncpa [#allocation4], 1

</llo_original>
